<compile_context>
chip_gen: v6e
topology: v6e:2x2x1
jax: 0.10.0
libtpu: 0.0.40
codegen_flags: <defaults>
</compile_context>

<pallas_src>
import jax
import jax.numpy as jnp
from jax.experimental import pallas as pl
from jax.experimental.pallas import tpu as pltpu


def _swiglu_kernel(x_ref, w1_ref, w2_ref, b1_ref, b2_ref, o_ref,
                   acc1_ref, acc2_ref):
    """One (tm, tn) output tile; grid axis 2 iterates over K chunks."""
    k = pl.program_id(2)

    @pl.when(k == 0)
    def _():
        # Fold bias into the accumulator init instead of adding in the epilogue.
        b1 = b1_ref[...].astype(jnp.float32)                 # (1, tn)
        b2 = b2_ref[...].astype(jnp.float32)
        acc1_ref[...] = jnp.broadcast_to(b1, acc1_ref.shape)
        acc2_ref[...] = jnp.broadcast_to(b2, acc2_ref.shape)

    x = x_ref[...]                                           # bf16 (tm, tk)
    acc1_ref[...] += jnp.dot(x, w1_ref[...],
                             preferred_element_type=jnp.float32)
    acc2_ref[...] += jnp.dot(x, w2_ref[...],
                             preferred_element_type=jnp.float32)

    @pl.when(k == pl.num_programs(2) - 1)
    def _():
        h1 = acc1_ref[...]                                   # linear1(x), f32
        h2 = acc2_ref[...]                                   # linear2(x), f32
        o_ref[...] = (h1 * jax.nn.sigmoid(h1) * h2).astype(o_ref.dtype)


def _round_up(v, m):
    return ((v + m - 1) // m) * m


def _pick_tile(dim, pref, align):
    """Big tiles when the dim is big; otherwise the dim rounded up to `align`."""
    if dim >= pref:
        return pref
    return max(align, _round_up(dim, align))


@jax.jit
def swiglu_pallas(x, w1_t, w2_t, b1, b2):
    """x: (..., K); w*_t: (K, N) == PyTorch weight.T; b*: (N,). Returns (..., N)."""
    orig_shape = x.shape
    out_dtype = x.dtype
    K = orig_shape[-1]
    N = w1_t.shape[1]
    x2 = x.reshape(-1, K)
    M = x2.shape[0]

    # Tile selection: prefer 512 (multiple of 256 -> full MXU on v6e/v7x),
    # aligned to the (8, 128) vreg tiling.
    tm = _pick_tile(M, 512, 8)
    tn = _pick_tile(N, 512, 128)
    tk = _pick_tile(K, 512, 128)

    # Pad ragged dims up to tile multiples (zero pad: K-padding contributes 0
    # to the dot; padded M rows / N cols are sliced away afterwards).
    Mp, Np, Kp = _round_up(M, tm), _round_up(N, tn), _round_up(K, tk)

    compute_dtype = jnp.bfloat16  # halve HBM traffic, native MXU path
    x2 = x2.astype(compute_dtype)
    w1c = w1_t.astype(compute_dtype)
    w2c = w2_t.astype(compute_dtype)

    if (Mp, Kp) != (M, K):
        x2 = jnp.pad(x2, ((0, Mp - M), (0, Kp - K)))
    if (Kp, Np) != (K, N):
        w1c = jnp.pad(w1c, ((0, Kp - K), (0, Np - N)))
        w2c = jnp.pad(w2c, ((0, Kp - K), (0, Np - N)))
    b1_2d = jnp.pad(b1.astype(jnp.float32).reshape(1, N), ((0, 0), (0, Np - N)))
    b2_2d = jnp.pad(b2.astype(jnp.float32).reshape(1, N), ((0, 0), (0, Np - N)))

    grid = (Mp // tm, Np // tn, Kp // tk)

    out = pl.pallas_call(
        _swiglu_kernel,
        out_shape=jax.ShapeDtypeStruct((Mp, Np), out_dtype),
        grid_spec=pltpu.PrefetchScalarGridSpec(
            num_scalar_prefetch=0,
            grid=grid,
            in_specs=[
                pl.BlockSpec((tm, tk), lambda i, j, k: (i, k)),   # x tile
                pl.BlockSpec((tk, tn), lambda i, j, k: (k, j)),   # W1^T tile
                pl.BlockSpec((tk, tn), lambda i, j, k: (k, j)),   # W2^T tile
                pl.BlockSpec((1, tn), lambda i, j, k: (0, j)),    # b1
                pl.BlockSpec((1, tn), lambda i, j, k: (0, j)),    # b2
            ],
            out_specs=pl.BlockSpec((tm, tn), lambda i, j, k: (i, j)),
            scratch_shapes=[
                pltpu.VMEM((tm, tn), jnp.float32),   # acc for linear1
                pltpu.VMEM((tm, tn), jnp.float32),   # acc for linear2
            ],
        ),
        compiler_params=pltpu.CompilerParams(
            dimension_semantics=("parallel", "parallel", "arbitrary"),
            vmem_limit_bytes=64 * 1024 * 1024,
        ),
    )(x2, w1c, w2c, b1_2d, b2_2d)

    out = out[:M, :N]
    return out.reshape(*orig_shape[:-1], N)


def init_swiglu_params(key, input_dim, output_dim, dtype=jnp.float32):
    """Deterministic nn.Linear-style init: U(-1/sqrt(in), 1/sqrt(in))."""
    k1, k2, k3, k4 = jax.random.split(key, 4)
    bound = 1.0 / (input_dim ** 0.5)
    # PyTorch stores weight as (out, in); we keep the transposed (in, out).
    w1_t = jax.random.uniform(k1, (input_dim, output_dim), dtype, -bound, bound)
    w2_t = jax.random.uniform(k2, (input_dim, output_dim), dtype, -bound, bound)
    b1 = jax.random.uniform(k3, (output_dim,), dtype, -bound, bound)
    b2 = jax.random.uniform(k4, (output_dim,), dtype, -bound, bound)
    return w1_t, w2_t, b1, b2


def swiglu_reference(x, w1_t, w2_t, b1, b2):
    h1 = x @ w1_t + b1
    h2 = x @ w2_t + b2
    return (h1 * jax.nn.sigmoid(h1)) * h2


if __name__ == "__main__":
    batch, seq, input_dim, output_dim = 2, 8, 32, 32

    key = jax.random.PRNGKey(0)
    kx, kp = jax.random.split(key)
    x = jax.random.normal(kx, (batch, seq, input_dim), dtype=jnp.float32)
    w1_t, w2_t, b1, b2 = init_swiglu_params(kp, input_dim, output_dim)

    out = swiglu_pallas(x, w1_t, w2_t, b1, b2)
    out = jax.block_until_ready(out)

    ref = swiglu_reference(x, w1_t, w2_t, b1, b2)
    assert out.shape == (batch, seq, output_dim)
    # bf16 streams with f32 accumulation -> relaxed tolerance vs f32 reference.
    assert jnp.allclose(out, ref, atol=2e-2, rtol=2e-2), "mismatch vs reference"

    print("KERNEL_OK")
</pallas_src>

<mosaic_0001>
module attributes {stable_mosaic.version = 11 : i64} {
  func.func @_swiglu_kernel(%arg0: i32, %arg1: i32, %arg2: i32, %arg3: memref<16x128xbf16, #tpu.memory_space<vmem>>, %arg4: memref<128x128xbf16, #tpu.memory_space<vmem>>, %arg5: memref<128x128xbf16, #tpu.memory_space<vmem>>, %arg6: memref<1x128xf32, #tpu.memory_space<vmem>>, %arg7: memref<1x128xf32, #tpu.memory_space<vmem>>, %arg8: memref<16x128xf32, #tpu.memory_space<vmem>>, %arg9: memref<16x128xf32, #tpu.memory_space<vmem>>, %arg10: memref<16x128xf32, #tpu.memory_space<vmem>>) attributes {dimension_semantics = [#tpu.dimension_semantics<parallel>, #tpu.dimension_semantics<parallel>, #tpu.dimension_semantics<arbitrary>], iteration_bounds = array<i64: 1, 1, 1>, scalar_prefetch = 0 : i64, scratch_operands = 2 : i64, tpu.core_type = #tpu.core_type<tc>, window_params = [{transform_indices = @transform_0, window_bounds = array<i64: 16, 128>}, {transform_indices = @transform_1, window_bounds = array<i64: 128, 128>}, {transform_indices = @transform_2, window_bounds = array<i64: 128, 128>}, {transform_indices = @transform_3, window_bounds = array<i64: 1, 128>}, {transform_indices = @transform_4, window_bounds = array<i64: 1, 128>}, {transform_indices = @transform_5, window_bounds = array<i64: 16, 128>}]} {
    %c0_i32 = arith.constant 0 : i32
    %0 = arith.cmpi eq, %arg2, %c0_i32 : i32
    %1 = arith.extui %0 : i1 to i32
    %c0_i32_0 = arith.constant 0 : i32
    %2 = arith.cmpi ne, %1, %c0_i32_0 : i32
    scf.if %2 {
      %c0_17 = arith.constant 0 : index
      %c0_18 = arith.constant 0 : index
      %17 = vector.load %arg6[%c0_17, %c0_18] : memref<1x128xf32, #tpu.memory_space<vmem>>, vector<1x128xf32>
      %c0_19 = arith.constant 0 : index
      %c0_20 = arith.constant 0 : index
      %18 = vector.load %arg7[%c0_19, %c0_20] : memref<1x128xf32, #tpu.memory_space<vmem>>, vector<1x128xf32>
      %19 = vector.shape_cast %17 : vector<1x128xf32> to vector<1x128xf32>
      %20 = vector.broadcast %19 : vector<1x128xf32> to vector<16x128xf32>
      %c0_21 = arith.constant 0 : index
      %c0_22 = arith.constant 0 : index
      %21 = vector.load %arg9[%c0_21, %c0_22] : memref<16x128xf32, #tpu.memory_space<vmem>>, vector<16x128xf32>
      tpu.vector_store %arg9[%c0_21, %c0_22], %20 {strides = array<i32>} : memref<16x128xf32, #tpu.memory_space<vmem>>, vector<16x128xf32>,
      %22 = vector.shape_cast %18 : vector<1x128xf32> to vector<1x128xf32>
      %23 = vector.broadcast %22 : vector<1x128xf32> to vector<16x128xf32>
      %c0_23 = arith.constant 0 : index
      %c0_24 = arith.constant 0 : index
      %24 = vector.load %arg10[%c0_23, %c0_24] : memref<16x128xf32, #tpu.memory_space<vmem>>, vector<16x128xf32>
      tpu.vector_store %arg10[%c0_23, %c0_24], %23 {strides = array<i32>} : memref<16x128xf32, #tpu.memory_space<vmem>>, vector<16x128xf32>,
    } else {
    }
    %c0 = arith.constant 0 : index
    %c0_1 = arith.constant 0 : index
    %3 = vector.load %arg3[%c0, %c0_1] : memref<16x128xbf16, #tpu.memory_space<vmem>>, vector<16x128xbf16>
    %c0_2 = arith.constant 0 : index
    %c0_3 = arith.constant 0 : index
    %4 = vector.load %arg9[%c0_2, %c0_3] : memref<16x128xf32, #tpu.memory_space<vmem>>, vector<16x128xf32>
    %c0_4 = arith.constant 0 : index
    %c0_5 = arith.constant 0 : index
    %5 = vector.load %arg4[%c0_4, %c0_5] : memref<128x128xbf16, #tpu.memory_space<vmem>>, vector<128x128xbf16>
    %cst = arith.constant dense<0.000000e+00> : vector<16x128xf32>
    %6 = tpu.matmul %3, %5, %cst {dimension_numbers = #tpu.dot_dimension_numbers<[1], [0], [0], [1], [0, 0, 1, 1], [], []>} : vector<16x128xbf16>, vector<128x128xbf16>, vector<16x128xf32> -> vector<16x128xf32>
    %7 = arith.addf %4, %6 : vector<16x128xf32>
    %c0_6 = arith.constant 0 : index
    %c0_7 = arith.constant 0 : index
    %8 = vector.load %arg9[%c0_6, %c0_7] : memref<16x128xf32, #tpu.memory_space<vmem>>, vector<16x128xf32>
    tpu.vector_store %arg9[%c0_6, %c0_7], %7 {strides = array<i32>} : memref<16x128xf32, #tpu.memory_space<vmem>>, vector<16x128xf32>,
    %c0_8 = arith.constant 0 : index
    %c0_9 = arith.constant 0 : index
    %9 = vector.load %arg10[%c0_8, %c0_9] : memref<16x128xf32, #tpu.memory_space<vmem>>, vector<16x128xf32>
    %c0_10 = arith.constant 0 : index
    %c0_11 = arith.constant 0 : index
    %10 = vector.load %arg5[%c0_10, %c0_11] : memref<128x128xbf16, #tpu.memory_space<vmem>>, vector<128x128xbf16>
    %cst_12 = arith.constant dense<0.000000e+00> : vector<16x128xf32>
    %11 = tpu.matmul %3, %10, %cst_12 {dimension_numbers = #tpu.dot_dimension_numbers<[1], [0], [0], [1], [0, 0, 1, 1], [], []>} : vector<16x128xbf16>, vector<128x128xbf16>, vector<16x128xf32> -> vector<16x128xf32>
    %12 = arith.addf %9, %11 : vector<16x128xf32>
    %c0_13 = arith.constant 0 : index
    %c0_14 = arith.constant 0 : index
    %13 = vector.load %arg10[%c0_13, %c0_14] : memref<16x128xf32, #tpu.memory_space<vmem>>, vector<16x128xf32>
    tpu.vector_store %arg10[%c0_13, %c0_14], %12 {strides = array<i32>} : memref<16x128xf32, #tpu.memory_space<vmem>>, vector<16x128xf32>,
    %c0_i32_15 = arith.constant 0 : i32
    %14 = arith.cmpi eq, %arg2, %c0_i32_15 : i32
    %15 = arith.extui %14 : i1 to i32
    %c0_i32_16 = arith.constant 0 : i32
    %16 = arith.cmpi ne, %15, %c0_i32_16 : i32
    scf.if %16 {
      %c0_17 = arith.constant 0 : index
      %c0_18 = arith.constant 0 : index
      %17 = vector.load %arg9[%c0_17, %c0_18] : memref<16x128xf32, #tpu.memory_space<vmem>>, vector<16x128xf32>
      %c0_19 = arith.constant 0 : index
      %c0_20 = arith.constant 0 : index
      %18 = vector.load %arg10[%c0_19, %c0_20] : memref<16x128xf32, #tpu.memory_space<vmem>>, vector<16x128xf32>
      %19 = arith.negf %17 : vector<16x128xf32>
      %20 = math.exp %19 : vector<16x128xf32>
      %cst_21 = arith.constant 1.000000e+00 : f32
      %21 = vector.broadcast %cst_21 : f32 to vector<16x128xf32>
      %22 = arith.addf %21, %20 : vector<16x128xf32>
      %23 = arith.divf %21, %22 : vector<16x128xf32>
      %24 = arith.mulf %17, %23 : vector<16x128xf32>
      %25 = arith.mulf %24, %18 : vector<16x128xf32>
      %c0_22 = arith.constant 0 : index
      %c0_23 = arith.constant 0 : index
      %26 = vector.load %arg8[%c0_22, %c0_23] : memref<16x128xf32, #tpu.memory_space<vmem>>, vector<16x128xf32>
      tpu.vector_store %arg8[%c0_22, %c0_23], %25 {strides = array<i32>} : memref<16x128xf32, #tpu.memory_space<vmem>>, vector<16x128xf32>,
    } else {
    }
    return
  }
  func.func @transform_0(%arg0: i32, %arg1: i32, %arg2: i32) -> (i32, i32) {
    %c0_i32 = arith.constant 0 : i32
    return %arg0, %arg2 : i32, i32
  }
  func.func @transform_1(%arg0: i32, %arg1: i32, %arg2: i32) -> (i32, i32) {
    %c0_i32 = arith.constant 0 : i32
    return %arg2, %arg1 : i32, i32
  }
  func.func @transform_2(%arg0: i32, %arg1: i32, %arg2: i32) -> (i32, i32) {
    %c0_i32 = arith.constant 0 : i32
    return %arg2, %arg1 : i32, i32
  }
  func.func @transform_3(%arg0: i32, %arg1: i32, %arg2: i32) -> (i32, i32) {
    %c0_i32 = arith.constant 0 : i32
    %c0_i32_0 = arith.constant 0 : i32
    return %c0_i32, %arg1 : i32, i32
  }
  func.func @transform_4(%arg0: i32, %arg1: i32, %arg2: i32) -> (i32, i32) {
    %c0_i32 = arith.constant 0 : i32
    %c0_i32_0 = arith.constant 0 : i32
    return %c0_i32, %arg1 : i32, i32
  }
  func.func @transform_5(%arg0: i32, %arg1: i32, %arg2: i32) -> (i32, i32) {
    %c0_i32 = arith.constant 0 : i32
    return %arg0, %arg1 : i32, i32
  }
}

</mosaic_0001>

<llo_original>
// kernel: swiglu_pallas.1
$region0: #{swiglu_pallas.1}
  #allocation0 [shape = 'u32[]', space=smem, size = 0x4, offset = 0x4, fixed_abs, tag = 'smem constant byte address 0x4 - core index']
  #allocation1 [shape = 'u32[144,128]{1,0:T(1,128)}', space=vmem, size = 0x12000, scoped, tag = 'internal scratch']
  #allocation2 [shape = 'f32[16,128]{1,0:T(8,128)}', space=vmem, size = 0x2000, scoped, tag = 'scratch operand']
  #allocation3 [shape = 'f32[16,128]{1,0:T(8,128)}', space=vmem, size = 0x2000, scoped, tag = 'scratch operand']
  %s0 = inlined_call_operand.vmem [shape: bf16[16,128], index: 0, kind: input, shape index: {}]
  %s1 = inlined_call_operand.vmem [shape: bf16[128,128], index: 1, kind: input, shape index: {}]
  %s2 = inlined_call_operand.vmem [shape: bf16[128,128], index: 2, kind: input, shape index: {}]
  %s3 = inlined_call_operand.vmem [shape: f32[1,128], index: 3, kind: input, shape index: {}]
  %s4 = inlined_call_operand.vmem [shape: f32[1,128], index: 4, kind: input, shape index: {}]
  %s5 = inlined_call_operand.vmem [shape: f32[16,128], index: 5, kind: output, shape index: {}]
  %s6 = sld [smem:[#allocation0]]
  $region38: #{swiglu_pallas.1} parent=0
    _
  %s8 = ssub.s32 1, %s6
  %s9 = scalar_select 0, %s8, %s6
  // Predicated region
  $region2: #{swiglu_pallas.1} parent=0 // pred_check
    _
  $region3: #{swiglu_pallas.1} parent=0 // pred_check_branch
    %11 = sbr.rel (0) target = $region5
  $region4: #{swiglu_pallas.1} parent=0 // pred_region
    _
  $region5: #{swiglu_pallas.1} parent=0 // pred_fallthru
    _
  // Predicated region
  $region6: #{swiglu_pallas.1} parent=0 // pred_check
    _
  $region7: #{swiglu_pallas.1} parent=0 // pred_check_branch
    %13 = sbr.rel (0) target = $region9
  $region8: #{swiglu_pallas.1} parent=0 // pred_region
    _
  $region9: #{swiglu_pallas.1} parent=0 // pred_fallthru
    _
  // Predicated region
  $region10: #{swiglu_pallas.1} parent=0 // pred_check
    _
  $region11: #{swiglu_pallas.1} parent=0 // pred_check_branch
    %15 = sbr.rel (0) target = $region13
  $region12: #{swiglu_pallas.1} parent=0 // pred_region
    _
  $region13: #{swiglu_pallas.1} parent=0 // pred_fallthru
    _
  // Predicated region
  $region14: #{swiglu_pallas.1} parent=0 // pred_check
    _
  $region15: #{swiglu_pallas.1} parent=0 // pred_check_branch
    %17 = sbr.rel (0) target = $region17
  $region16: #{swiglu_pallas.1} parent=0 // pred_region
    _
  $region17: #{swiglu_pallas.1} parent=0 // pred_fallthru
    _
  // Predicated region
  $region18: #{swiglu_pallas.1} parent=0 // pred_check
    _
  $region19: #{swiglu_pallas.1} parent=0 // pred_check_branch
    %19 = sbr.rel (0) target = $region21
  $region20: #{swiglu_pallas.1} parent=0 // pred_region
    _
  $region21: #{swiglu_pallas.1} parent=0 // pred_fallthru
    _
  %p21 = scmp.eq.s32.totalorder 0, 0
  // Predicated region
  $region22: #{swiglu_pallas.1} parent=0 // pred_check
    %p22 = pneg %p21
  $region23: #{swiglu_pallas.1} parent=0 // pred_check_branch
    %24 = sbr.rel (%p22) target = $region25
  $region24: #{swiglu_pallas.1} parent=0 // pred_region
    %v25 = vld [vmem:[%s3] sm:$0x1]
    %v26 = vld [vmem:[%s4] sm:$0x1]
    %v28 = vlaneseq
    %v29 = vshrl.u32 %v28, 7
    %v30 = vsub.s32 0, %v29
    %v31 = vrot.slane %v25, %v30
    %33 = vst [vmem:[#allocation2] sm:$0xff] %v31
    %34 = vst [vmem:[#allocation2 + $0x8] sm:$0xff] %v31
    %v36 = vlaneseq
    %v37 = vshrl.u32 %v36, 7
    %v38 = vsub.s32 0, %v37
    %v39 = vrot.slane %v26, %v38
    %41 = vst [vmem:[#allocation3] sm:$0xff] %v39
    %42 = vst [vmem:[#allocation3 + $0x8] sm:$0xff] %v39
  $region25: #{swiglu_pallas.1} parent=0 // pred_fallthru
    _
  %v43 = vld [vmem:[%s0] sm:$0xf]
  %v44 = vld [vmem:[%s0 + $0x4] sm:$0xf]
  %v45 = vld [vmem:[#allocation2] sm:$0xff]
  %v46 = vld [vmem:[#allocation2 + $0x8] sm:$0xff]
  %v47 = vld [vmem:[%s1] sm:$0xf]
  %v48 = vld [vmem:[%s1 + $0x4] sm:$0xf]
  %v49 = vld [vmem:[%s1 + $0x8] sm:$0xf]
  %v50 = vld [vmem:[%s1 + $0xc] sm:$0xf]
  %v51 = vld [vmem:[%s1 + $0x10] sm:$0xf]
  %v52 = vld [vmem:[%s1 + $0x14] sm:$0xf]
  %v53 = vld [vmem:[%s1 + $0x18] sm:$0xf]
  %v54 = vld [vmem:[%s1 + $0x1c] sm:$0xf]
  %v55 = vld [vmem:[%s1 + $0x20] sm:$0xf]
  %v56 = vld [vmem:[%s1 + $0x24] sm:$0xf]
  %v57 = vld [vmem:[%s1 + $0x28] sm:$0xf]
  %v58 = vld [vmem:[%s1 + $0x2c] sm:$0xf]
  %v59 = vld [vmem:[%s1 + $0x30] sm:$0xf]
  %v60 = vld [vmem:[%s1 + $0x34] sm:$0xf]
  %v61 = vld [vmem:[%s1 + $0x38] sm:$0xf]
  %v62 = vld [vmem:[%s1 + $0x3c] sm:$0xf]
  %v65 = vunpack.c.l.b16 %v43
  %v66 = vunpack.c.l.b16 %v44
  %v67 = vpack.c.b16 %v66, %v65
  %v85 = vunpack.c.l.b16 %v47
  %v86 = vunpack.c.l.b16 %v48
  %v87 = vunpack.c.l.b16 %v49
  %v88 = vunpack.c.l.b16 %v50
  %v89 = vunpack.c.l.b16 %v51
  %v90 = vunpack.c.l.b16 %v52
  %v91 = vunpack.c.l.b16 %v53
  %v92 = vunpack.c.l.b16 %v54
  %v93 = vunpack.c.l.b16 %v55
  %v94 = vunpack.c.l.b16 %v56
  %v95 = vunpack.c.l.b16 %v57
  %v96 = vunpack.c.l.b16 %v58
  %v97 = vunpack.c.l.b16 %v59
  %v98 = vunpack.c.l.b16 %v60
  %v99 = vunpack.c.l.b16 %v61
  %v100 = vunpack.c.l.b16 %v62
  %v101 = vpack.c.b16 %v86, %v85
  %v102 = vpack.c.b16 %v88, %v87
  %v103 = vpack.c.b16 %v90, %v89
  %v104 = vpack.c.b16 %v92, %v91
  %v105 = vpack.c.b16 %v94, %v93
  %v106 = vpack.c.b16 %v96, %v95
  %v107 = vpack.c.b16 %v98, %v97
  %v108 = vpack.c.b16 %v100, %v99
  %117 = vmatprep.subr.bf16.mxu0 0
  %118 = vmatpush1.bf16.msra.mxu0 %v108
  %119 = vmatprep.subr.bf16.mxu0 0
  %120 = vmatpush1.bf16.msra.mxu0 %v107
  %121 = vmatprep.subr.bf16.mxu0 0
  %122 = vmatpush1.bf16.msra.mxu0 %v106
  %123 = vmatprep.subr.bf16.mxu0 0
  %124 = vmatpush1.bf16.msra.mxu0 %v105
  %125 = vmatprep.subr.bf16.mxu0 0
  %126 = vmatpush1.bf16.msra.mxu0 %v104
  %127 = vmatprep.subr.bf16.mxu0 0
  %128 = vmatpush1.bf16.msra.mxu0 %v103
  %129 = vmatprep.subr.bf16.mxu0 0
  %130 = vmatpush1.bf16.msra.mxu0 %v102
  %131 = vmatprep.subr.bf16.mxu0 0
  %132 = vmatpush1.bf16.msra.mxu0 %v101
  %133 = vmatprep.subr.bf16.mxu0 0
  %134 = vmatpush2.bf16.msra.mxu0 0
  %135 = vmatprep.subr.bf16.mxu0 0
  %136 = vmatpush2.bf16.msra.mxu0 0
  %137 = vmatprep.subr.bf16.mxu0 0
  %138 = vmatpush2.bf16.msra.mxu0 0
  %139 = vmatprep.subr.bf16.mxu0 0
  %140 = vmatpush2.bf16.msra.mxu0 0
  %141 = vmatprep.subr.bf16.mxu0 0
  %142 = vmatpush2.bf16.msra.mxu0 0
  %143 = vmatprep.subr.bf16.mxu0 0
  %144 = vmatpush2.bf16.msra.mxu0 0
  %145 = vmatprep.subr.bf16.mxu0 0
  %146 = vmatpush2.bf16.msra.mxu0 0
  %147 = vmatprep.subr.bf16.mxu0 0
  %148 = vmatpush2.bf16.msra.mxu0 0
  %149 = vmatprep.mubr.bf16.mxu0 0
  %150 = vmatmul.mubr.bf16.gmra.mxu0 %v67
  %v151 = vpop.f32.mrf.mxu0
  %v152 = vadd.f32 0.0, %v151
  %v153 = vpop.f32.mrf.mxu0
  %v154 = vpop.f32.mrf.mxu0
  %v155 = vadd.f32 0.0, %v154
  %v156 = vpop.f32.mrf.mxu0
  %157 = vdwg.mxu0
  %v158 = vadd.f32 %v45, %v152
  %v159 = vadd.f32 %v46, %v155
  %160 = vst [vmem:[#allocation2] sm:$0xff] %v158
  %161 = vst [vmem:[#allocation2 + $0x8] sm:$0xff] %v159
  %v162 = vld [vmem:[#allocation3] sm:$0xff]
  %v163 = vld [vmem:[#allocation3 + $0x8] sm:$0xff]
  %v164 = vld [vmem:[%s2] sm:$0xf]
  %v165 = vld [vmem:[%s2 + $0x4] sm:$0xf]
  %v166 = vld [vmem:[%s2 + $0x8] sm:$0xf]
  %v167 = vld [vmem:[%s2 + $0xc] sm:$0xf]
  %v168 = vld [vmem:[%s2 + $0x10] sm:$0xf]
  %v169 = vld [vmem:[%s2 + $0x14] sm:$0xf]
  %v170 = vld [vmem:[%s2 + $0x18] sm:$0xf]
  %v171 = vld [vmem:[%s2 + $0x1c] sm:$0xf]
  %v172 = vld [vmem:[%s2 + $0x20] sm:$0xf]
  %v173 = vld [vmem:[%s2 + $0x24] sm:$0xf]
  %v174 = vld [vmem:[%s2 + $0x28] sm:$0xf]
  %v175 = vld [vmem:[%s2 + $0x2c] sm:$0xf]
  %v176 = vld [vmem:[%s2 + $0x30] sm:$0xf]
  %v177 = vld [vmem:[%s2 + $0x34] sm:$0xf]
  %v178 = vld [vmem:[%s2 + $0x38] sm:$0xf]
  %v179 = vld [vmem:[%s2 + $0x3c] sm:$0xf]
  %v196 = vunpack.c.l.b16 %v164
  %v197 = vunpack.c.l.b16 %v165
  %v198 = vunpack.c.l.b16 %v166
  %v199 = vunpack.c.l.b16 %v167
  %v200 = vunpack.c.l.b16 %v168
  %v201 = vunpack.c.l.b16 %v169
  %v202 = vunpack.c.l.b16 %v170
  %v203 = vunpack.c.l.b16 %v171
  %v204 = vunpack.c.l.b16 %v172
  %v205 = vunpack.c.l.b16 %v173
  %v206 = vunpack.c.l.b16 %v174
  %v207 = vunpack.c.l.b16 %v175
  %v208 = vunpack.c.l.b16 %v176
  %v209 = vunpack.c.l.b16 %v177
  %v210 = vunpack.c.l.b16 %v178
  %v211 = vunpack.c.l.b16 %v179
  %v212 = vpack.c.b16 %v197, %v196
  %v213 = vpack.c.b16 %v199, %v198
  %v214 = vpack.c.b16 %v201, %v200
  %v215 = vpack.c.b16 %v203, %v202
  %v216 = vpack.c.b16 %v205, %v204
  %v217 = vpack.c.b16 %v207, %v206
  %v218 = vpack.c.b16 %v209, %v208
  %v219 = vpack.c.b16 %v211, %v210
  %228 = vmatprep.subr.bf16.mxu0 0
  %229 = vmatpush1.bf16.msra.mxu0 %v219
  %230 = vmatprep.subr.bf16.mxu0 0
  %231 = vmatpush1.bf16.msra.mxu0 %v218
  %232 = vmatprep.subr.bf16.mxu0 0
  %233 = vmatpush1.bf16.msra.mxu0 %v217
  %234 = vmatprep.subr.bf16.mxu0 0
  %235 = vmatpush1.bf16.msra.mxu0 %v216
  %236 = vmatprep.subr.bf16.mxu0 0
  %237 = vmatpush1.bf16.msra.mxu0 %v215
  %238 = vmatprep.subr.bf16.mxu0 0
  %239 = vmatpush1.bf16.msra.mxu0 %v214
  %240 = vmatprep.subr.bf16.mxu0 0
  %241 = vmatpush1.bf16.msra.mxu0 %v213
  %242 = vmatprep.subr.bf16.mxu0 0
  %243 = vmatpush1.bf16.msra.mxu0 %v212
  %244 = vmatprep.subr.bf16.mxu0 0
  %245 = vmatpush2.bf16.msra.mxu0 0
  %246 = vmatprep.subr.bf16.mxu0 0
  %247 = vmatpush2.bf16.msra.mxu0 0
  %248 = vmatprep.subr.bf16.mxu0 0
  %249 = vmatpush2.bf16.msra.mxu0 0
  %250 = vmatprep.subr.bf16.mxu0 0
  %251 = vmatpush2.bf16.msra.mxu0 0
  %252 = vmatprep.subr.bf16.mxu0 0
  %253 = vmatpush2.bf16.msra.mxu0 0
  %254 = vmatprep.subr.bf16.mxu0 0
  %255 = vmatpush2.bf16.msra.mxu0 0
  %256 = vmatprep.subr.bf16.mxu0 0
  %257 = vmatpush2.bf16.msra.mxu0 0
  %258 = vmatprep.subr.bf16.mxu0 0
  %259 = vmatpush2.bf16.msra.mxu0 0
  %260 = vmatprep.mubr.bf16.mxu0 0
  %261 = vmatmul.mubr.bf16.gmra.mxu0 %v67
  %v262 = vpop.f32.mrf.mxu0
  %v263 = vadd.f32 0.0, %v262
  %v264 = vpop.f32.mrf.mxu0
  %v265 = vpop.f32.mrf.mxu0
  %v266 = vadd.f32 0.0, %v265
  %v267 = vpop.f32.mrf.mxu0
  %268 = vdwg.mxu0
  %v269 = vadd.f32 %v162, %v263
  %v270 = vadd.f32 %v163, %v266
  %271 = vst [vmem:[#allocation3] sm:$0xff] %v269
  %272 = vst [vmem:[#allocation3 + $0x8] sm:$0xff] %v270
  // Predicated region
  $region26: #{swiglu_pallas.1} parent=0 // pred_check
    %p273 = pneg %p21
  $region27: #{swiglu_pallas.1} parent=0 // pred_check_branch
    %275 = sbr.rel (%p273) target = $region29
  $region28: #{swiglu_pallas.1} parent=0 // pred_region
    %v276 = vld [vmem:[#allocation2] sm:$0xff]
    %v277 = vld [vmem:[#allocation2 + $0x8] sm:$0xff]
    %v278 = vld [vmem:[#allocation3] sm:$0xff]
    %v279 = vld [vmem:[#allocation3 + $0x8] sm:$0xff]
    %v280 = vxor.u32 %v276, 2147483648
    %v281 = vxor.u32 %v277, 2147483648
    %v282 = vmul.f32 %v280, 1.442695
    %v283 = vpow.pop %v282
    %v284 = vmul.f32 %v281, 1.442695
    %v285 = vpow.pop %v284
    %v286 = vadd.f32 %v283, 1.0
    %v287 = vadd.f32 %v285, 1.0
    %v288 = vrcp.pop %v286
    %v289 = vmul.f32 1.0, %v288
    %v290 = vrcp.pop %v287
    %v291 = vmul.f32 1.0, %v290
    %v292 = vmul.f32 %v276, %v289
    %v293 = vmul.f32 %v277, %v291
    %v294 = vmul.f32 %v292, %v278
    %v295 = vmul.f32 %v293, %v279
    %296 = vst [vmem:[%s5] sm:$0xff] %v294
    %297 = vst [vmem:[%s5 + $0x8] sm:$0xff] %v295
  $region29: #{swiglu_pallas.1} parent=0 // pred_fallthru
    _
  // Predicated region
  $region30: #{swiglu_pallas.1} parent=0 // pred_check
    _
  $region31: #{swiglu_pallas.1} parent=0 // pred_check_branch
    %299 = sbr.rel (0) target = $region33
  $region32: #{swiglu_pallas.1} parent=0 // pred_region
    _
  $region33: #{swiglu_pallas.1} parent=0 // pred_fallthru
    _
  // Predicated region
  $region34: #{swiglu_pallas.1} parent=0 // pred_check
    _
  $region35: #{swiglu_pallas.1} parent=0 // pred_check_branch
    %301 = sbr.rel (0) target = $region37
  $region36: #{swiglu_pallas.1} parent=0 // pred_region
    _
  $region37: #{swiglu_pallas.1} parent=0 // pred_fallthru
    _

</llo_original>
